<compile_context>
chip_gen: v7x
topology: tpu7x:2x2x1
jax: 0.10.0
libtpu: 0.0.40
codegen_flags: <defaults>
</compile_context>

<pallas_src>
import functools
import math

import jax
import jax.numpy as jnp
import numpy as np
from jax.experimental import pallas as pl
from jax.experimental.pallas import tpu as pltpu


def syntax_rel_kernel(tgt_ref, x_ref, root_ref, w_ref, b_ref, kern_ref,
                      sel_ref, out_ref):
    # Block shapes (one S-aligned row tile of the flattened (B*S) problem):
    #   tgt_ref  : (TILE_M, 1)     int32  gather target (-1 root, -2 pad, j>=0 row j)
    #   x_ref    : (TILE_M, D)     compute dtype (tiled, pipelined)
    #   root_ref : (1, D)          f32
    #   w_ref    : (2D, 2H)        compute dtype, block-diag [[Wh,0],[0,Wt]]
    #   b_ref    : (1, 2H)         f32, [bh | bt]
    #   kern_ref : (H, H*R)        compute dtype (columns rel-major: r*H + h)
    #   sel_ref  : (H*R, R_pad)    f32 0/1, sel[r*H + h, r] = 1
    #   out_ref  : (TILE_M, R_pad) f32
    tile_m, _ = x_ref.shape
    two_h = b_ref.shape[1]
    h = two_h // 2
    hr = kern_ref.shape[1]
    r = hr // h

    x = x_ref[...]                                                  # (TILE_M, D)
    tgt = tgt_ref[...]                                              # (TILE_M, 1)

    # ---- tile-local gather: targets never leave their own sentence/tile ----
    row0 = pl.program_id(0) * tile_m
    tgt_local = jnp.where(tgt >= 0, tgt - row0, tgt)                # keep -1/-2 sentinels
    col = jax.lax.broadcasted_iota(jnp.int32, (tile_m, tile_m), 1)
    onehot = (col == tgt_local).astype(x.dtype)                     # (TILE_M, TILE_M)
    gathered = jnp.dot(onehot, x, preferred_element_type=jnp.float32)
    root_sel = (tgt == -1).astype(jnp.float32)                      # (TILE_M, 1)
    gathered = gathered + root_sel * root_ref[...]                  # (TILE_M, D) f32

    # ---- fused head/tail FF: single MXU push with K=2D, N=2H ---------------
    xcat = jnp.concatenate([gathered.astype(x.dtype), x], axis=1)   # (TILE_M, 2D)
    ht = jnp.maximum(
        jnp.dot(xcat, w_ref[...], preferred_element_type=jnp.float32)
        + b_ref[...], 0.0)                                          # (TILE_M, 2H) f32
    head = ht[:, :h]                                                # (TILE_M, H)
    tail = ht[:, h:]                                                # (TILE_M, H)

    # ---- bilinear form ------------------------------------------------------
    xk = jnp.dot(head.astype(kern_ref.dtype), kern_ref[...],
                 preferred_element_type=jnp.float32)                # (TILE_M, H*R)
    tail_rep = jnp.tile(tail, (1, r))                               # (TILE_M, H*R) lane tile
    p = xk * tail_rep                                               # f32 VPU product
    out_ref[...] = jnp.dot(p, sel_ref[...],
                           preferred_element_type=jnp.float32)      # (TILE_M, R_pad)


def _round_up(x, m):
    return (x + m - 1) // m * m


def _lcm(a, b):
    return a * b // math.gcd(a, b)


@functools.partial(jax.jit, static_argnames=("rel_dim", "compute_dtype"))
def syntax_rel_forward(inp, head_id, root, wh, bh, wt, bt, kernel, *,
                       rel_dim, compute_dtype=jnp.bfloat16):
    B, S, D = inp.shape
    H = wh.shape[1]
    R = rel_dim
    M = B * S
    cdtype = jnp.dtype(compute_dtype)
    itemsize = cdtype.itemsize

    # ---- tiling: S-aligned row tiles over the flattened (B*S) dimension ----
    sub = 16 if itemsize == 2 else 8              # sublane packing for the dtype
    unit = _lcm(S, sub)                           # tiles must hold whole sentences
    cap_units = max(1, 512 // unit)               # <=512 rows per tile
    want_units = max(1, (M + unit - 1) // unit)
    # prefer >=2 tiles when the problem allows it (v7x has 2 TensorCores)
    per_tile_units = min(cap_units, max(1, (want_units + 1) // 2))
    TILE_M = per_tile_units * unit
    M_pad = _round_up(M, TILE_M)
    n_tiles = M_pad // TILE_M
    R_pad = _round_up(R, 128)                     # lane-dense output slab

    # ---- flattened activations + per-row gather target ---------------------
    x_flat = inp.reshape(M, D).astype(cdtype)
    hid = head_id.astype(jnp.int32)                                 # (B, S)
    base = (jnp.arange(B, dtype=jnp.int32) * S)[:, None]            # (B, 1)
    tgt = jnp.where(hid == 0, -1, base + hid - 1).reshape(M, 1)     # (M, 1)
    if M_pad > M:
        x_flat = jnp.pad(x_flat, ((0, M_pad - M), (0, 0)))
        tgt = jnp.pad(tgt, ((0, M_pad - M), (0, 0)), constant_values=-2)

    # ---- fused FF weight: block-diagonal [[Wh, 0], [0, Wt]], bias [bh|bt] ---
    zpad = jnp.zeros((D, H), cdtype)
    w_blk = jnp.concatenate(
        [jnp.concatenate([wh.astype(cdtype), zpad], axis=1),
         jnp.concatenate([zpad, wt.astype(cdtype)], axis=1)], axis=0)   # (2D, 2H)
    b_cat = jnp.concatenate([bh, bt]).reshape(1, 2 * H).astype(jnp.float32)

    # ---- 0/1 per-relation-block selector (the genuine reduce, kept on MXU) --
    cols = np.arange(H * R)
    sel = (cols[:, None] // H == np.arange(R_pad)[None, :]).astype(np.float32)  # (H*R, R_pad)

    # ---- cost estimate (no quadratic one-hot term any more) -----------------
    flops = 2 * M_pad * (TILE_M * D              # tile-local one-hot gather
                         + (2 * D) * (2 * H)     # fused FF
                         + H * (H * R)           # head @ kernel
                         + (H * R) * R_pad)      # per-block reduce
    bytes_accessed = (M_pad * D * itemsize + M_pad * 4 + D * 4
                      + (2 * D) * (2 * H) * itemsize + 2 * H * 4
                      + H * H * R * itemsize + H * R * R_pad * 4
                      + M_pad * R_pad * 4)

    # ---- explicit VMEM budget (v7x: 64 MiB physical / 32 MiB scoped default)
    vmem_bytes = (2 * TILE_M * D * itemsize          # x, double-buffered
                  + 2 * TILE_M * R_pad * 4           # out, double-buffered
                  + 2 * TILE_M * 128 * 4             # tgt block (lane-padded)
                  + (2 * D) * (2 * H) * itemsize + 2 * H * 4 + D * 4
                  + H * H * R * itemsize + H * R * R_pad * 4
                  + TILE_M * TILE_M * itemsize       # one-hot temporary
                  + 4 * TILE_M * (H * R) * 4)        # xk / tail_rep / p / ht temporaries
    vmem_limit = int(min(max(2 * vmem_bytes, 8 << 20), 30 << 20))

    out = pl.pallas_call(
        syntax_rel_kernel,
        out_shape=jax.ShapeDtypeStruct((M_pad, R_pad), jnp.float32),
        grid=(n_tiles,),
        in_specs=[
            pl.BlockSpec((TILE_M, 1), lambda i: (i, 0)),        # tgt (per tile)
            pl.BlockSpec((TILE_M, D), lambda i: (i, 0)),        # x (tiled, pipelined)
            pl.BlockSpec((1, D), lambda i: (0, 0)),             # root
            pl.BlockSpec((2 * D, 2 * H), lambda i: (0, 0)),     # fused FF weight
            pl.BlockSpec((1, 2 * H), lambda i: (0, 0)),         # fused FF bias
            pl.BlockSpec((H, H * R), lambda i: (0, 0)),         # bilinear kernel
            pl.BlockSpec((H * R, R_pad), lambda i: (0, 0)),     # selector matrix
        ],
        out_specs=pl.BlockSpec((TILE_M, R_pad), lambda i: (i, 0)),
        compiler_params=pltpu.CompilerParams(
            dimension_semantics=("parallel",),
            vmem_limit_bytes=vmem_limit),
        cost_estimate=pl.CostEstimate(flops=flops, transcendentals=0,
                                      bytes_accessed=bytes_accessed),
    )(
        tgt,
        x_flat,
        root.reshape(1, D).astype(jnp.float32),
        w_blk,
        b_cat,
        kernel.astype(cdtype),
        jnp.asarray(sel),
    )
    return out[:M, :R].reshape(B, S, R)


# ---------------------------- pure-JAX reference -----------------------------
def gather_head_jax(inp, root, head_id):
    B, S, D = inp.shape
    appended = jnp.concatenate(
        [jnp.broadcast_to(root[None, None, :], (B, 1, D)), inp], axis=1)  # (B, S+1, D)
    return jnp.take_along_axis(appended, head_id[:, :, None], axis=1)     # (B, S, D)


def reference(inp, head_id, root, wh, bh, wt, bt, kernel, rel_dim):
    B, S, D = inp.shape
    H = wh.shape[1]
    g = gather_head_jax(inp, root, head_id)
    head = jax.nn.relu(g @ wh + bh)
    tail = jax.nn.relu(inp @ wt + bt)
    x = (head @ kernel).reshape(B, S, rel_dim, H)
    return jnp.einsum("bsrh,bsh->bsr", x, tail)


if __name__ == "__main__":
    # Small shapes consistent with the module.
    B, S = 2, 8
    input_dim, hidden_dim, rel_dim = 32, 32, 16

    key = jax.random.PRNGKey(0)
    k_in, k_id, k_root, k_kern, k_wh, k_bh, k_wt, k_bt = jax.random.split(key, 8)

    inp = jax.random.normal(k_in, (B, S, input_dim), dtype=jnp.float32)
    # head_id in [0, S]; 0 means "root".
    head_id = jax.random.randint(k_id, (B, S), 0, S + 1, dtype=jnp.int32)

    # Deterministic parameter init (shapes from __init__; values synthetic).
    root = jax.random.uniform(k_root, (input_dim,), dtype=jnp.float32)        # uniform_
    xav = float(np.sqrt(6.0 / (hidden_dim + hidden_dim * rel_dim)))
    kernel = jax.random.uniform(k_kern, (hidden_dim, hidden_dim * rel_dim),
                                minval=-xav, maxval=xav, dtype=jnp.float32)   # xavier_uniform_
    bnd = float(1.0 / np.sqrt(input_dim))
    wh = jax.random.uniform(k_wh, (input_dim, hidden_dim),
                            minval=-bnd, maxval=bnd, dtype=jnp.float32)
    bh = jax.random.uniform(k_bh, (hidden_dim,),
                            minval=-bnd, maxval=bnd, dtype=jnp.float32)
    wt = jax.random.uniform(k_wt, (input_dim, hidden_dim),
                            minval=-bnd, maxval=bnd, dtype=jnp.float32)
    bt = jax.random.uniform(k_bt, (hidden_dim,),
                            minval=-bnd, maxval=bnd, dtype=jnp.float32)

    ref = reference(inp, head_id, root, wh, bh, wt, bt, kernel, rel_dim)

    # Default path: bf16 MXU operands, f32 accumulate/epilogue.
    out_bf16 = syntax_rel_forward(inp, head_id, root, wh, bh, wt, bt, kernel,
                                  rel_dim=rel_dim)
    out_bf16 = jax.block_until_ready(out_bf16)
    np.testing.assert_allclose(np.asarray(out_bf16), np.asarray(ref),
                               rtol=3e-2, atol=3e-2)

    # f32 path (also exercises the multi-tile tile-local gather): tight check.
    out_f32 = syntax_rel_forward(inp, head_id, root, wh, bh, wt, bt, kernel,
                                 rel_dim=rel_dim, compute_dtype=jnp.float32)
    out_f32 = jax.block_until_ready(out_f32)
    np.testing.assert_allclose(np.asarray(out_f32), np.asarray(ref),
                               rtol=1e-4, atol=1e-4)

    print("KERNEL_OK")
</pallas_src>

<mosaic_0001>
module attributes {stable_mosaic.version = 11 : i64} {
  func.func @syntax_rel_kernel(%arg0: i32, %arg1: memref<16x1xi32, #tpu.memory_space<vmem>>, %arg2: memref<16x32xbf16, #tpu.memory_space<vmem>>, %arg3: memref<1x32xf32, #tpu.memory_space<vmem>>, %arg4: memref<64x64xbf16, #tpu.memory_space<vmem>>, %arg5: memref<1x64xf32, #tpu.memory_space<vmem>>, %arg6: memref<32x512xbf16, #tpu.memory_space<vmem>>, %arg7: memref<512x128xf32, #tpu.memory_space<vmem>>, %arg8: memref<16x128xf32, #tpu.memory_space<vmem>>) attributes {dimension_semantics = [#tpu.dimension_semantics<parallel>], iteration_bounds = array<i64: 1>, scalar_prefetch = 0 : i64, scratch_operands = 0 : i64, tpu.core_type = #tpu.core_type<tc>, window_params = [{transform_indices = @transform_0, window_bounds = array<i64: 16, 1>}, {transform_indices = @transform_1, window_bounds = array<i64: 16, 32>}, {pipeline_mode = #tpu.pipeline_mode<synchronous>, transform_indices = @transform_2, window_bounds = array<i64: 1, 32>}, {pipeline_mode = #tpu.pipeline_mode<synchronous>, transform_indices = @transform_3, window_bounds = array<i64: 64, 64>}, {pipeline_mode = #tpu.pipeline_mode<synchronous>, transform_indices = @transform_4, window_bounds = array<i64: 1, 64>}, {pipeline_mode = #tpu.pipeline_mode<synchronous>, transform_indices = @transform_5, window_bounds = array<i64: 32, 512>}, {pipeline_mode = #tpu.pipeline_mode<synchronous>, transform_indices = @transform_6, window_bounds = array<i64: 512, 128>}, {transform_indices = @transform_7, window_bounds = array<i64: 16, 128>}]} {
    %c0 = arith.constant 0 : index
    %c0_0 = arith.constant 0 : index
    %0 = vector.load %arg2[%c0, %c0_0] : memref<16x32xbf16, #tpu.memory_space<vmem>>, vector<16x32xbf16>
    %c0_1 = arith.constant 0 : index
    %c0_2 = arith.constant 0 : index
    %1 = vector.load %arg1[%c0_1, %c0_2] : memref<16x1xi32, #tpu.memory_space<vmem>>, vector<16x1xi32>
    %c16_i32 = arith.constant 16 : i32
    %2 = arith.muli %arg0, %c16_i32 : i32
    %c0_i32 = arith.constant 0 : i32
    %3 = vector.broadcast %c0_i32 : i32 to vector<16x1xi32>
    %4 = arith.cmpi sge, %1, %3 : vector<16x1xi32>
    %5 = vector.broadcast %2 : i32 to vector<16x1xi32>
    %6 = arith.subi %1, %5 : vector<16x1xi32>
    %7 = arith.select %4, %6, %1 : vector<16x1xi1>, vector<16x1xi32>
    %8 = tpu.iota {dimensions = array<i32: 1>} : vector<16x16xi32>
    %9 = vector.broadcast %7 : vector<16x1xi32> to vector<16x16xi32>
    %10 = arith.cmpi eq, %8, %9 : vector<16x16xi32>
    %11 = arith.extui %10 : vector<16x16xi1> to vector<16x16xi32>
    %12 = arith.sitofp %11 : vector<16x16xi32> to vector<16x16xf32>
    %13 = arith.truncf %12 : vector<16x16xf32> to vector<16x16xbf16>
    %cst = arith.constant dense<0.000000e+00> : vector<16x32xf32>
    %14 = tpu.matmul %13, %0, %cst {dimension_numbers = #tpu.dot_dimension_numbers<[1], [0], [0], [1], [0, 0, 1, 1], [], []>} : vector<16x16xbf16>, vector<16x32xbf16>, vector<16x32xf32> -> vector<16x32xf32>
    %c-1_i32 = arith.constant -1 : i32
    %15 = vector.broadcast %c-1_i32 : i32 to vector<16x1xi32>
    %16 = arith.cmpi eq, %1, %15 : vector<16x1xi32>
    %17 = arith.extui %16 : vector<16x1xi1> to vector<16x1xi32>
    %18 = arith.sitofp %17 : vector<16x1xi32> to vector<16x1xf32>
    %c0_3 = arith.constant 0 : index
    %c0_4 = arith.constant 0 : index
    %19 = vector.load %arg3[%c0_3, %c0_4] : memref<1x32xf32, #tpu.memory_space<vmem>>, vector<1x32xf32>
    %20 = vector.broadcast %18 : vector<16x1xf32> to vector<16x32xf32>
    %21 = vector.broadcast %19 : vector<1x32xf32> to vector<16x32xf32>
    %22 = arith.mulf %20, %21 : vector<16x32xf32>
    %23 = arith.addf %14, %22 : vector<16x32xf32>
    %24 = arith.truncf %23 : vector<16x32xf32> to vector<16x32xbf16>
    %25 = tpu.concatenate %24, %0 in 1 : vector<16x32xbf16>, vector<16x32xbf16> -> vector<16x64xbf16>
    %c0_5 = arith.constant 0 : index
    %c0_6 = arith.constant 0 : index
    %26 = vector.load %arg4[%c0_5, %c0_6] : memref<64x64xbf16, #tpu.memory_space<vmem>>, vector<64x64xbf16>
    %cst_7 = arith.constant dense<0.000000e+00> : vector<16x64xf32>
    %27 = tpu.matmul %25, %26, %cst_7 {dimension_numbers = #tpu.dot_dimension_numbers<[1], [0], [0], [1], [0, 0, 1, 1], [], []>} : vector<16x64xbf16>, vector<64x64xbf16>, vector<16x64xf32> -> vector<16x64xf32>
    %c0_8 = arith.constant 0 : index
    %c0_9 = arith.constant 0 : index
    %28 = vector.load %arg5[%c0_8, %c0_9] : memref<1x64xf32, #tpu.memory_space<vmem>>, vector<1x64xf32>
    %29 = vector.broadcast %28 : vector<1x64xf32> to vector<16x64xf32>
    %30 = arith.addf %27, %29 : vector<16x64xf32>
    %cst_10 = arith.constant 0.000000e+00 : f32
    %31 = vector.broadcast %cst_10 : f32 to vector<16x64xf32>
    %32 = arith.maximumf %30, %31 : vector<16x64xf32>
    %33 = vector.extract_strided_slice %32 {offsets = [0, 0], sizes = [16, 32], strides = [1, 1]} : vector<16x64xf32> to vector<16x32xf32>
    %34 = vector.extract_strided_slice %32 {offsets = [0, 32], sizes = [16, 32], strides = [1, 1]} : vector<16x64xf32> to vector<16x32xf32>
    %35 = arith.truncf %33 : vector<16x32xf32> to vector<16x32xbf16>
    %c0_11 = arith.constant 0 : index
    %c0_12 = arith.constant 0 : index
    %36 = vector.load %arg6[%c0_11, %c0_12] : memref<32x512xbf16, #tpu.memory_space<vmem>>, vector<32x512xbf16>
    %cst_13 = arith.constant dense<0.000000e+00> : vector<16x512xf32>
    %37 = tpu.matmul %35, %36, %cst_13 {dimension_numbers = #tpu.dot_dimension_numbers<[1], [0], [0], [1], [0, 0, 1, 1], [], []>} : vector<16x32xbf16>, vector<32x512xbf16>, vector<16x512xf32> -> vector<16x512xf32>
    %38 = tpu.concatenate %34, %34, %34, %34, %34, %34, %34, %34, %34, %34, %34, %34, %34, %34, %34, %34 in 1 : vector<16x32xf32>, vector<16x32xf32>, vector<16x32xf32>, vector<16x32xf32>, vector<16x32xf32>, vector<16x32xf32>, vector<16x32xf32>, vector<16x32xf32>, vector<16x32xf32>, vector<16x32xf32>, vector<16x32xf32>, vector<16x32xf32>, vector<16x32xf32>, vector<16x32xf32>, vector<16x32xf32>, vector<16x32xf32> -> vector<16x512xf32>
    %39 = arith.mulf %37, %38 : vector<16x512xf32>
    %c0_14 = arith.constant 0 : index
    %c0_15 = arith.constant 0 : index
    %40 = vector.load %arg7[%c0_14, %c0_15] : memref<512x128xf32, #tpu.memory_space<vmem>>, vector<512x128xf32>
    %cst_16 = arith.constant dense<0.000000e+00> : vector<16x128xf32>
    %41 = tpu.matmul %39, %40, %cst_16 {dimension_numbers = #tpu.dot_dimension_numbers<[1], [0], [0], [1], [0, 0, 1, 1], [], []>} : vector<16x512xf32>, vector<512x128xf32>, vector<16x128xf32> -> vector<16x128xf32>
    %c0_17 = arith.constant 0 : index
    %c0_18 = arith.constant 0 : index
    %42 = vector.load %arg8[%c0_17, %c0_18] : memref<16x128xf32, #tpu.memory_space<vmem>>, vector<16x128xf32>
    tpu.vector_store %arg8[%c0_17, %c0_18], %41 {strides = array<i32>} : memref<16x128xf32, #tpu.memory_space<vmem>>, vector<16x128xf32>,
    return
  }
  func.func @transform_0(%arg0: i32) -> (i32, i32) {
    %c0_i32 = arith.constant 0 : i32
    %c0_i32_0 = arith.constant 0 : i32
    return %arg0, %c0_i32 : i32, i32
  }
  func.func @transform_1(%arg0: i32) -> (i32, i32) {
    %c0_i32 = arith.constant 0 : i32
    %c0_i32_0 = arith.constant 0 : i32
    return %arg0, %c0_i32 : i32, i32
  }
  func.func @transform_2(%arg0: i32) -> (i32, i32) {
    %c0_i32 = arith.constant 0 : i32
    %c0_i32_0 = arith.constant 0 : i32
    %c0_i32_1 = arith.constant 0 : i32
    return %c0_i32, %c0_i32_0 : i32, i32
  }
  func.func @transform_3(%arg0: i32) -> (i32, i32) {
    %c0_i32 = arith.constant 0 : i32
    %c0_i32_0 = arith.constant 0 : i32
    %c0_i32_1 = arith.constant 0 : i32
    return %c0_i32, %c0_i32_0 : i32, i32
  }
  func.func @transform_4(%arg0: i32) -> (i32, i32) {
    %c0_i32 = arith.constant 0 : i32
    %c0_i32_0 = arith.constant 0 : i32
    %c0_i32_1 = arith.constant 0 : i32
    return %c0_i32, %c0_i32_0 : i32, i32
  }
  func.func @transform_5(%arg0: i32) -> (i32, i32) {
    %c0_i32 = arith.constant 0 : i32
    %c0_i32_0 = arith.constant 0 : i32
    %c0_i32_1 = arith.constant 0 : i32
    return %c0_i32, %c0_i32_0 : i32, i32
  }
  func.func @transform_6(%arg0: i32) -> (i32, i32) {
    %c0_i32 = arith.constant 0 : i32
    %c0_i32_0 = arith.constant 0 : i32
    %c0_i32_1 = arith.constant 0 : i32
    return %c0_i32, %c0_i32_0 : i32, i32
  }
  func.func @transform_7(%arg0: i32) -> (i32, i32) {
    %c0_i32 = arith.constant 0 : i32
    %c0_i32_0 = arith.constant 0 : i32
    return %arg0, %c0_i32 : i32, i32
  }
}

</mosaic_0001>

<llo_original>
// kernel: syntax_rel_forward.1
$region0: #{syntax_rel_forward.1}
  #allocation0 [shape = 'u32[]', space=smem, size = 0x4, offset = 0x4, fixed_abs, tag = 'smem constant byte address 0x4 - core index']
  #allocation1 [shape = 'u32[144,128]{1,0:T(1,128)}', space=vmem, size = 0x12000, scoped, tag = 'internal scratch']
  %s0 = inlined_call_operand.vmem [shape: s32[16,1], index: 0, kind: input, shape index: {}]
  %s1 = inlined_call_operand.vmem [shape: bf16[16,32], index: 1, kind: input, shape index: {}]
  %s2 = inlined_call_operand.vmem [shape: f32[1,32], index: 2, kind: input, shape index: {}]
  %s3 = inlined_call_operand.vmem [shape: bf16[64,64], index: 3, kind: input, shape index: {}]
  %s4 = inlined_call_operand.vmem [shape: f32[1,64], index: 4, kind: input, shape index: {}]
  %s5 = inlined_call_operand.vmem [shape: bf16[32,512], index: 5, kind: input, shape index: {}]
  %s6 = inlined_call_operand.hbm [shape: f32[512,128], index: 6, kind: input, shape index: {}]
  %s7 = inlined_call_operand.vmem [shape: f32[16,128], index: 7, kind: output, shape index: {}]
  %s8 = sld [smem:[#allocation0]]
  $region42: #{syntax_rel_forward.1} parent=0
    _
  %s10 = ssub.s32 1, %s8
  %s11 = scalar_select 0, %s10, %s8
  $region1: #{syntax_rel_forward.1} parent=0
    #allocation2 [shape = 'u8[262144]{0}', space=vmem, size = 0x40000, scoped, tag = 'input window, operand 6, single buffered']
    #allocation3 [shape = 's32[1]{0}', space=sflag, size = 0x4, scoped, tag = 'scoped memory for syntax_rel_forward.1']
    %12 = vsyncpa [#allocation3], 0
    // Predicated region
    $region2: #{syntax_rel_forward.1} parent=1 // pred_check
      _
    $region3: #{syntax_rel_forward.1} parent=1 // pred_check_branch
      %14 = sbr.rel (0) target = $region5
    $region4: #{syntax_rel_forward.1} parent=1 // pred_region
      _
    $region5: #{syntax_rel_forward.1} parent=1 // pred_fallthru
      _
    // Predicated region
    $region6: #{syntax_rel_forward.1} parent=1 // pred_check
      _
    $region7: #{syntax_rel_forward.1} parent=1 // pred_check_branch
      %16 = sbr.rel (0) target = $region9
    $region8: #{syntax_rel_forward.1} parent=1 // pred_region
      _
    $region9: #{syntax_rel_forward.1} parent=1 // pred_fallthru
      _
    // Predicated region
    $region10: #{syntax_rel_forward.1} parent=1 // pred_check
      _
    $region11: #{syntax_rel_forward.1} parent=1 // pred_check_branch
      %18 = sbr.rel (0) target = $region13
    $region12: #{syntax_rel_forward.1} parent=1 // pred_region
      _
    $region13: #{syntax_rel_forward.1} parent=1 // pred_fallthru
      _
    // Predicated region
    $region14: #{syntax_rel_forward.1} parent=1 // pred_check
      _
    $region15: #{syntax_rel_forward.1} parent=1 // pred_check_branch
      %20 = sbr.rel (0) target = $region17
    $region16: #{syntax_rel_forward.1} parent=1 // pred_region
      _
    $region17: #{syntax_rel_forward.1} parent=1 // pred_fallthru
      _
    // Predicated region
    $region18: #{syntax_rel_forward.1} parent=1 // pred_check
      _
    $region19: #{syntax_rel_forward.1} parent=1 // pred_check_branch
      %22 = sbr.rel (0) target = $region21
    $region20: #{syntax_rel_forward.1} parent=1 // pred_region
      _
    $region21: #{syntax_rel_forward.1} parent=1 // pred_fallthru
      _
    // Predicated region
    $region22: #{syntax_rel_forward.1} parent=1 // pred_check
      _
    $region23: #{syntax_rel_forward.1} parent=1 // pred_check_branch
      %24 = sbr.rel (0) target = $region25
    $region24: #{syntax_rel_forward.1} parent=1 // pred_region
      _
    $region25: #{syntax_rel_forward.1} parent=1 // pred_fallthru
      _
    // Predicated region
    $region26: #{syntax_rel_forward.1} parent=1 // pred_check
      _
    $region27: #{syntax_rel_forward.1} parent=1 // pred_check_branch
      %26 = sbr.rel (0) target = $region29
    $region28: #{syntax_rel_forward.1} parent=1 // pred_region
      %s28 = ssub.s32 8192, 8192
      %29 = vsyncadd [#allocation3], %s28
      %s30 = sshll.u32 [#allocation2], 4
      %s31 = int_to_ptr.vmem [resolvable:$true] %s30
      %36 = dma.hbm_to_vmem [thread:$0]  %s6, 8192, %s31, [#allocation3], 128, 128, 8
    $region29: #{syntax_rel_forward.1} parent=1 // pred_fallthru
      _
    // Predicated region
    $region30: #{syntax_rel_forward.1} parent=1 // pred_check
      _
    $region31: #{syntax_rel_forward.1} parent=1 // pred_check_branch
      %38 = sbr.rel (0) target = $region33
    $region32: #{syntax_rel_forward.1} parent=1 // pred_region
      %39 = dma.done [#allocation3], 8192
    $region33: #{syntax_rel_forward.1} parent=1 // pred_fallthru
      _
    %v41 = vld [vmem:[%s1] sm:$0xf]
    %v42 = vld [vmem:[%s1 + $0x4] sm:$0xf]
    %v43 = vld [vmem:[%s0] sm:$0xff]
    %v44 = vld [vmem:[%s0 + $0x8] sm:$0xff]
    %s45 = smul.u32 0, 16
    %vm46 = vcmp.ge.s32.totalorder %v43, 0
    %vm47 = vcmp.ge.s32.totalorder %v44, 0
    %v48 = vstv %s45
    %v49 = vsub.s32 %v43, %v48
    %v50 = vsub.s32 %v44, %v48
    %v51 = vsel %vm46, %v49, %v43
    %v52 = vsel %vm47, %v50, %v44
    %v53 = vlaneseq
    %v54 = vand.u32 %v53, 127
    %55 = vset.pattern.permute.xlu0 0
    %56 = vperm.xlu0 %55, %v51
    %v57 = vpop.permute.xlu0 %56
    %58 = vset.pattern.permute.xlu0 0
    %59 = vperm.xlu0 %58, %v52
    %v60 = vpop.permute.xlu0 %59
    %vm61 = vcmp.eq.s32.totalorder %v54, %v57
    %vm62 = vcmp.eq.s32.totalorder %v54, %v60
    %v63 = vsel %vm61, 1, 0
    %v64 = vsel %vm62, 1, 0
    %v65 = vcvt.s32.f32 %v63
    %v66 = vcvt.s32.f32 %v64
    %v67 = vpack.c.bf16 %v66, %v65
    %vm68 = vcmp.eq.s32.totalorder %v43, 4294967295
    %vm69 = vcmp.eq.s32.totalorder %v44, 4294967295
    %v70 = vsel %vm68, 1, 0
    %v71 = vsel %vm69, 1, 0
    %v72 = vcvt.s32.f32 %v70
    %v73 = vcvt.s32.f32 %v71
    %v74 = vld [vmem:[%s2] sm:$0x1]
    %76 = vset.pattern.permute.xlu0 0
    %77 = vperm.xlu0 %76, %v72
    %v78 = vpop.permute.xlu0 %77
    %81 = vset.pattern.permute.xlu0 0
    %82 = vperm.xlu0 %81, %v73
    %v83 = vpop.permute.xlu0 %82
    %v86 = vlaneseq
    %v87 = vshrl.u32 %v86, 7
    %v88 = vsub.s32 0, %v87
    %v89 = vrot.slane %v74, %v88
    %v91 = vmul.f32 %v78, %v89
    %v92 = vmul.f32 %v83, %v89
    %v95 = vunpack.c.l.b16 %v41
    %v96 = vunpack.c.l.b16 %v42
    %v97 = vpack.c.b16 %v96, %v95
    %vm99 = vcmask 130048
    %v101 = vsel %vm99, %v67, 0
    %103 = vmatprep.subr.bf16.mxu0 0
    %104 = vmatpush1.bf16.msra.mxu0 %v97
    %105 = vmatprep.subr.bf16.mxu0 0
    %106 = vmatpush1.bf16.msra.mxu0 0
    %107 = vmatprep.subr.bf16.mxu0 0
    %108 = vmatpush1.bf16.msra.mxu0 0
    %109 = vmatprep.subr.bf16.mxu0 0
    %110 = vmatpush1.bf16.msra.mxu0 0
    %111 = vmatprep.subr.bf16.mxu0 0
    %112 = vmatpush1.bf16.msra.mxu0 0
    %113 = vmatprep.subr.bf16.mxu0 0
    %114 = vmatpush1.bf16.msra.mxu0 0
    %115 = vmatprep.subr.bf16.mxu0 0
    %116 = vmatpush1.bf16.msra.mxu0 0
    %117 = vmatprep.subr.bf16.mxu0 0
    %118 = vmatpush1.bf16.msra.mxu0 0
    %119 = vmatprep.subr.bf16.mxu0 0
    %120 = vmatpush1.bf16.msra.mxu0 0
    %121 = vmatprep.subr.bf16.mxu0 0
    %122 = vmatpush1.bf16.msra.mxu0 0
    %123 = vmatprep.subr.bf16.mxu0 0
    %124 = vmatpush1.bf16.msra.mxu0 0
    %125 = vmatprep.subr.bf16.mxu0 0
    %126 = vmatpush1.bf16.msra.mxu0 0
    %127 = vmatprep.subr.bf16.mxu0 0
    %128 = vmatpush1.bf16.msra.mxu0 0
    %129 = vmatprep.subr.bf16.mxu0 0
    %130 = vmatpush1.bf16.msra.mxu0 0
    %131 = vmatprep.subr.bf16.mxu0 0
    %132 = vmatpush1.bf16.msra.mxu0 0
    %133 = vmatprep.subr.bf16.mxu0 0
    %134 = vmatpush1.bf16.msra.mxu0 0
    %135 = vmatprep.mubr.bf16.mxu0 0
    %136 = vmatmul.mubr.bf16.gmra.mrb[0].mxu0 %v101
    %v137 = vpop.f32.mrb[0].mxu0
    %v138 = vadd.f32 %v91, %v137
    %v139 = vpop.f32.mrb[0].mxu0
    %v140 = vpop.f32.mrb[0].mxu0
    %v141 = vadd.f32 %v92, %v140
    %v142 = vpop.f32.mrb[0].mxu0
    %143 = vdwg.mxu0
    %v144 = vpack.c.bf16 %v141, %v138
    %145 = vrot.lane.b32.xlu0 %v97, 32
    %v146 = vpop.permute.xlu0 %145
    %vm147 = vcmask 261120
    %v150 = vsel %vm147, %v144, %v146
    %v151 = vld [vmem:[%s3] sm:$0xf]
    %v152 = vld [vmem:[%s3 + $0x4] sm:$0xf]
    %v153 = vld [vmem:[%s3 + $0x8] sm:$0xf]
    %v154 = vld [vmem:[%s3 + $0xc] sm:$0xf]
    %v155 = vld [vmem:[%s3 + $0x10] sm:$0xf]
    %v156 = vld [vmem:[%s3 + $0x14] sm:$0xf]
    %v157 = vld [vmem:[%s3 + $0x18] sm:$0xf]
    %v158 = vld [vmem:[%s3 + $0x1c] sm:$0xf]
    %v159 = vld [vmem:[%s4] sm:$0x1]
    %v161 = vlaneseq
    %v162 = vshrl.u32 %v161, 7
    %v163 = vsub.s32 0, %v162
    %v164 = vrot.slane %v159, %v163
    %v174 = vunpack.c.l.b16 %v151
    %v175 = vunpack.c.l.b16 %v152
    %v176 = vunpack.c.l.b16 %v153
    %v177 = vunpack.c.l.b16 %v154
    %v178 = vunpack.c.l.b16 %v155
    %v179 = vunpack.c.l.b16 %v156
    %v180 = vunpack.c.l.b16 %v157
    %v181 = vunpack.c.l.b16 %v158
    %v182 = vpack.c.b16 %v175, %v174
    %v183 = vpack.c.b16 %v177, %v176
    %v184 = vpack.c.b16 %v179, %v178
    %v185 = vpack.c.b16 %v181, %v180
    %vm190 = vcmask 523264
    %v191 = vsel %vm190, %v150, 0
    %193 = vmatprep.subr.bf16.mxu0 0
    %194 = vmatpush1.bf16.msra.mxu0 %v182
    %195 = vmatprep.subr.bf16.mxu0 0
    %196 = vmatpush1.bf16.msra.mxu0 %v183
    %197 = vmatprep.subr.bf16.mxu0 0
    %198 = vmatpush1.bf16.msra.mxu0 %v184
    %199 = vmatprep.subr.bf16.mxu0 0
    %200 = vmatpush1.bf16.msra.mxu0 %v185
    %201 = vmatprep.subr.bf16.mxu0 0
    %202 = vmatpush1.bf16.msra.mxu0 0
    %203 = vmatprep.subr.bf16.mxu0 0
    %204 = vmatpush1.bf16.msra.mxu0 0
    %205 = vmatprep.subr.bf16.mxu0 0
    %206 = vmatpush1.bf16.msra.mxu0 0
    %207 = vmatprep.subr.bf16.mxu0 0
    %208 = vmatpush1.bf16.msra.mxu0 0
    %209 = vmatprep.subr.bf16.mxu0 0
    %210 = vmatpush1.bf16.msra.mxu0 0
    %211 = vmatprep.subr.bf16.mxu0 0
    %212 = vmatpush1.bf16.msra.mxu0 0
    %213 = vmatprep.subr.bf16.mxu0 0
    %214 = vmatpush1.bf16.msra.mxu0 0
    %215 = vmatprep.subr.bf16.mxu0 0
    %216 = vmatpush1.bf16.msra.mxu0 0
    %217 = vmatprep.subr.bf16.mxu0 0
    %218 = vmatpush1.bf16.msra.mxu0 0
    %219 = vmatprep.subr.bf16.mxu0 0
    %220 = vmatpush1.bf16.msra.mxu0 0
    %221 = vmatprep.subr.bf16.mxu0 0
    %222 = vmatpush1.bf16.msra.mxu0 0
    %223 = vmatprep.subr.bf16.mxu0 0
    %224 = vmatpush1.bf16.msra.mxu0 0
    %225 = vmatprep.mubr.bf16.mxu0 0
    %226 = vmatmul.mubr.bf16.gmra.mrb[0].mxu0 %v191
    %v227 = vpop.f32.mrb[0].mxu0
    %v228 = vadd.f32 %v164, %v227
    %v229 = vpop.f32.mrb[0].mxu0
    %v230 = vpop.f32.mrb[0].mxu0
    %v231 = vadd.f32 %v164, %v230
    %v232 = vpop.f32.mrb[0].mxu0
    %233 = vdwg.mxu0
    %v234 = vmax.f32 %v228, 0.0
    %v235 = vmax.f32 %v231, 0.0
    %v236 = vpack.c.bf16 %v235, %v234
    %v237 = vld [vmem:[%s5] sm:$0xff]
    %v238 = vld [vmem:[%s5 + $0x8] sm:$0xff]
    %v239 = vld [vmem:[%s5 + $0x10] sm:$0xff]
    %v240 = vld [vmem:[%s5 + $0x18] sm:$0xff]
    %v241 = vld [vmem:[%s5 + $0x20] sm:$0xff]
    %v242 = vld [vmem:[%s5 + $0x28] sm:$0xff]
    %v243 = vld [vmem:[%s5 + $0x30] sm:$0xff]
    %v244 = vld [vmem:[%s5 + $0x38] sm:$0xff]
    %v253 = vunpack.c.l.b16 %v237
    %v254 = vunpack.c.h.b16 %v237
    %v255 = vunpack.c.l.b16 %v238
    %v256 = vunpack.c.h.b16 %v238
    %v257 = vunpack.c.l.b16 %v239
    %v258 = vunpack.c.h.b16 %v239
    %v259 = vunpack.c.l.b16 %v240
    %v260 = vunpack.c.h.b16 %v240
    %v261 = vunpack.c.l.b16 %v241
    %v262 = vunpack.c.h.b16 %v241
    %v263 = vunpack.c.l.b16 %v242
    %v264 = vunpack.c.h.b16 %v242
    %v265 = vunpack.c.l.b16 %v243
    %v266 = vunpack.c.h.b16 %v243
    %v267 = vunpack.c.l.b16 %v244
    %v268 = vunpack.c.h.b16 %v244
    %v269 = vpack.c.b16 %v257, %v253
    %v270 = vpack.c.b16 %v258, %v254
    %v271 = vpack.c.b16 %v259, %v255
    %v272 = vpack.c.b16 %v260, %v256
    %v273 = vpack.c.b16 %v265, %v261
    %v274 = vpack.c.b16 %v266, %v262
    %v275 = vpack.c.b16 %v267, %v263
    %v276 = vpack.c.b16 %v268, %v264
    %v286 = vsel %vm147, %v236, 0
    %288 = vmatprep.subr.bf16.mxu0 %v270
    %289 = vmatpush1.bf16.msra.mxu0 %v269
    %290 = vmatprep.subr.bf16.mxu0 %v274
    %291 = vmatpush1.bf16.msra.mxu0 %v273
    %292 = vmatprep.subr.bf16.mxu0 0
    %293 = vmatpush1.bf16.msra.mxu0 0
    %294 = vmatprep.subr.bf16.mxu0 0
    %295 = vmatpush1.bf16.msra.mxu0 0
    %296 = vmatprep.subr.bf16.mxu0 0
    %297 = vmatpush1.bf16.msra.mxu0 0
    %298 = vmatprep.subr.bf16.mxu0 0
    %299 = vmatpush1.bf16.msra.mxu0 0
    %300 = vmatprep.subr.bf16.mxu0 0
    %301 = vmatpush1.bf16.msra.mxu0 0
    %302 = vmatprep.subr.bf16.mxu0 0
    %303 = vmatpush1.bf16.msra.mxu0 0
    %304 = vmatprep.subr.bf16.mxu0 0
    %305 = vmatpush1.bf16.msra.mxu0 0
    %306 = vmatprep.subr.bf16.mxu0 0
    %307 = vmatpush1.bf16.msra.mxu0 0
    %308 = vmatprep.subr.bf16.mxu0 0
    %309 = vmatpush1.bf16.msra.mxu0 0
    %310 = vmatprep.subr.bf16.mxu0 0
    %311 = vmatpush1.bf16.msra.mxu0 0
    %312 = vmatprep.subr.bf16.mxu0 0
    %313 = vmatpush1.bf16.msra.mxu0 0
    %314 = vmatprep.subr.bf16.mxu0 0
    %315 = vmatpush1.bf16.msra.mxu0 0
    %316 = vmatprep.subr.bf16.mxu0 0
    %317 = vmatpush1.bf16.msra.mxu0 0
    %318 = vmatprep.subr.bf16.mxu0 0
    %319 = vmatpush1.bf16.msra.mxu0 0
    %320 = vmatprep.mubr.bf16.mxu0 0
    %321 = vmatmul.mubr.bf16.gmra.mrb[0].mxu0 %v286
    %v322 = vpop.f32.mrb[0].mxu0
    %v323 = vadd.f32 0.0, %v322
    %v324 = vpop.f32.mrb[0].mxu0
    %v325 = vadd.f32 0.0, %v324
    %v326 = vpop.f32.mrb[0].mxu0
    %v327 = vadd.f32 0.0, %v326
    %v328 = vpop.f32.mrb[0].mxu0
    %v329 = vadd.f32 0.0, %v328
    %330 = vdwg.mxu0
    %331 = vmatprep.subr.bf16.mxu0 %v272
    %332 = vmatpush1.bf16.msra.mxu0 %v271
    %333 = vmatprep.subr.bf16.mxu0 %v276
    %334 = vmatpush1.bf16.msra.mxu0 %v275
    %335 = vmatprep.subr.bf16.mxu0 0
    %336 = vmatpush1.bf16.msra.mxu0 0
    %337 = vmatprep.subr.bf16.mxu0 0
    %338 = vmatpush1.bf16.msra.mxu0 0
    %339 = vmatprep.subr.bf16.mxu0 0
    %340 = vmatpush1.bf16.msra.mxu0 0
    %341 = vmatprep.subr.bf16.mxu0 0
    %342 = vmatpush1.bf16.msra.mxu0 0
    %343 = vmatprep.subr.bf16.mxu0 0
    %344 = vmatpush1.bf16.msra.mxu0 0
    %345 = vmatprep.subr.bf16.mxu0 0
    %346 = vmatpush1.bf16.msra.mxu0 0
    %347 = vmatprep.subr.bf16.mxu0 0
    %348 = vmatpush1.bf16.msra.mxu0 0
    %349 = vmatprep.subr.bf16.mxu0 0
    %350 = vmatpush1.bf16.msra.mxu0 0
    %351 = vmatprep.subr.bf16.mxu0 0
    %352 = vmatpush1.bf16.msra.mxu0 0
    %353 = vmatprep.subr.bf16.mxu0 0
    %354 = vmatpush1.bf16.msra.mxu0 0
    %355 = vmatprep.subr.bf16.mxu0 0
    %356 = vmatpush1.bf16.msra.mxu0 0
    %357 = vmatprep.subr.bf16.mxu0 0
    %358 = vmatpush1.bf16.msra.mxu0 0
    %359 = vmatprep.subr.bf16.mxu0 0
    %360 = vmatpush1.bf16.msra.mxu0 0
    %361 = vmatprep.subr.bf16.mxu0 0
    %362 = vmatpush1.bf16.msra.mxu0 0
    %363 = vmatprep.mubr.bf16.mxu0 0
    %364 = vmatmul.mubr.bf16.gmra.mrb[0].mxu0 %v286
    %v365 = vpop.f32.mrb[0].mxu0
    %v366 = vadd.f32 0.0, %v365
    %v367 = vpop.f32.mrb[0].mxu0
    %v368 = vadd.f32 0.0, %v367
    %v369 = vpop.f32.mrb[0].mxu0
    %v370 = vadd.f32 0.0, %v369
    %v371 = vpop.f32.mrb[0].mxu0
    %v372 = vadd.f32 0.0, %v371
    %373 = vdwg.mxu0
    %376 = vrot.lane.b32.xlu0 %v234, 96
    %v377 = vpop.permute.xlu0 %376
    %378 = vrot.lane.b32.xlu0 %v235, 96
    %v379 = vpop.permute.xlu0 %378
    %382 = vrot.lane.b32.xlu0 %v234, 32
    %v383 = vpop.permute.xlu0 %382
    %384 = vrot.lane.b32.xlu0 %v235, 32
    %v385 = vpop.permute.xlu0 %384
    %388 = vrot.lane.b32.xlu0 %v234, 64
    %v389 = vpop.permute.xlu0 %388
    %390 = vrot.lane.b32.xlu0 %v235, 64
    %v391 = vpop.permute.xlu0 %390
    %v394 = vsel %vm147, %v377, %v234
    %v395 = vsel %vm147, %v379, %v235
    %v396 = vsel %vm190, %v394, %v383
    %v397 = vsel %vm190, %v395, %v385
    %vm398 = vcmask 785408
    %v399 = vsel %vm398, %v396, %v389
    %v400 = vsel %vm398, %v397, %v391
    %v401 = vmul.f32 %v323, %v399
    %v402 = vmul.f32 %v325, %v399
    %v403 = vmul.f32 %v366, %v399
    %v404 = vmul.f32 %v368, %v399
    %v405 = vmul.f32 %v327, %v400
    %v406 = vmul.f32 %v329, %v400
    %v407 = vmul.f32 %v370, %v400
    %v408 = vmul.f32 %v372, %v400
    %v409 = vld [vmem:[#allocation2] sm:$0xff]
    %v410 = vld [vmem:[#allocation2 + $0x8] sm:$0xff]
    %v411 = vld [vmem:[#allocation2 + $0x10] sm:$0xff]
    %v412 = vld [vmem:[#allocation2 + $0x18] sm:$0xff]
    %v413 = vld [vmem:[#allocation2 + $0x20] sm:$0xff]
    %v414 = vld [vmem:[#allocation2 + $0x28] sm:$0xff]
    %v415 = vld [vmem:[#allocation2 + $0x30] sm:$0xff]
    %v416 = vld [vmem:[#allocation2 + $0x38] sm:$0xff]
    %v417 = vld [vmem:[#allocation2 + $0x40] sm:$0xff]
    %v418 = vld [vmem:[#allocation2 + $0x48] sm:$0xff]
    %v419 = vld [vmem:[#allocation2 + $0x50] sm:$0xff]
    %v420 = vld [vmem:[#allocation2 + $0x58] sm:$0xff]
    %v421 = vld [vmem:[#allocation2 + $0x60] sm:$0xff]
    %v422 = vld [vmem:[#allocation2 + $0x68] sm:$0xff]
    %v423 = vld [vmem:[#allocation2 + $0x70] sm:$0xff]
    %v424 = vld [vmem:[#allocation2 + $0x78] sm:$0xff]
    %v425 = vld [vmem:[#allocation2 + $0x80] sm:$0xff]
    %v426 = vld [vmem:[#allocation2 + $0x88] sm:$0xff]
    %v427 = vld [vmem:[#allocation2 + $0x90] sm:$0xff]
    %v428 = vld [vmem:[#allocation2 + $0x98] sm:$0xff]
    %v429 = vld [vmem:[#allocation2 + $0xa0] sm:$0xff]
    %v430 = vld [vmem:[#allocation2 + $0xa8] sm:$0xff]
    %v431 = vld [vmem:[#allocation2 + $0xb0] sm:$0xff]
    %v432 = vld [vmem:[#allocation2 + $0xb8] sm:$0xff]
    %v433 = vld [vmem:[#allocation2 + $0xc0] sm:$0xff]
    %v434 = vld [vmem:[#allocation2 + $0xc8] sm:$0xff]
    %v435 = vld [vmem:[#allocation2 + $0xd0] sm:$0xff]
    %v436 = vld [vmem:[#allocation2 + $0xd8] sm:$0xff]
    %v437 = vld [vmem:[#allocation2 + $0xe0] sm:$0xff]
    %v438 = vld [vmem:[#allocation2 + $0xe8] sm:$0xff]
    %v439 = vld [vmem:[#allocation2 + $0xf0] sm:$0xff]
    %v440 = vld [vmem:[#allocation2 + $0xf8] sm:$0xff]
    %v441 = vld [vmem:[#allocation2 + $0x100] sm:$0xff]
    %v442 = vld [vmem:[#allocation2 + $0x108] sm:$0xff]
    %v443 = vld [vmem:[#allocation2 + $0x110] sm:$0xff]
    %v444 = vld [vmem:[#allocation2 + $0x118] sm:$0xff]
    %v445 = vld [vmem:[#allocation2 + $0x120] sm:$0xff]
    %v446 = vld [vmem:[#allocation2 + $0x128] sm:$0xff]
    %v447 = vld [vmem:[#allocation2 + $0x130] sm:$0xff]
    %v448 = vld [vmem:[#allocation2 + $0x138] sm:$0xff]
    %v449 = vld [vmem:[#allocation2 + $0x140] sm:$0xff]
    %v450 = vld [vmem:[#allocation2 + $0x148] sm:$0xff]
    %v451 = vld [vmem:[#allocation2 + $0x150] sm:$0xff]
    %v452 = vld [vmem:[#allocation2 + $0x158] sm:$0xff]
    %v453 = vld [vmem:[#allocation2 + $0x160] sm:$0xff]
    %v454 = vld [vmem:[#allocation2 + $0x168] sm:$0xff]
    %v455 = vld [vmem:[#allocation2 + $0x170] sm:$0xff]
    %v456 = vld [vmem:[#allocation2 + $0x178] sm:$0xff]
    %v457 = vld [vmem:[#allocation2 + $0x180] sm:$0xff]
    %v458 = vld [vmem:[#allocation2 + $0x188] sm:$0xff]
    %v459 = vld [vmem:[#allocation2 + $0x190] sm:$0xff]
    %v460 = vld [vmem:[#allocation2 + $0x198] sm:$0xff]
    %v461 = vld [vmem:[#allocation2 + $0x1a0] sm:$0xff]
    %v462 = vld [vmem:[#allocation2 + $0x1a8] sm:$0xff]
    %v463 = vld [vmem:[#allocation2 + $0x1b0] sm:$0xff]
    %v464 = vld [vmem:[#allocation2 + $0x1b8] sm:$0xff]
    %v465 = vld [vmem:[#allocation2 + $0x1c0] sm:$0xff]
    %v466 = vld [vmem:[#allocation2 + $0x1c8] sm:$0xff]
    %v467 = vld [vmem:[#allocation2 + $0x1d0] sm:$0xff]
    %v468 = vld [vmem:[#allocation2 + $0x1d8] sm:$0xff]
    %v469 = vld [vmem:[#allocation2 + $0x1e0] sm:$0xff]
    %v470 = vld [vmem:[#allocation2 + $0x1e8] sm:$0xff]
    %v471 = vld [vmem:[#allocation2 + $0x1f0] sm:$0xff]
    %v472 = vld [vmem:[#allocation2 + $0x1f8] sm:$0xff]
    %473 = vmatprep.subr.mxu0 0.0
    %474 = vmatpush1.msra.mxu0 %v409
    %475 = vmatprep.subr.mxu0 0.0
    %476 = vmatpush1.msra.mxu0 %v410
    %477 = vmatprep.subr.mxu0 0.0
    %478 = vmatpush1.msra.mxu0 %v411
    %479 = vmatprep.subr.mxu0 0.0
    %480 = vmatpush1.msra.mxu0 %v412
    %481 = vmatprep.subr.mxu0 0.0
    %482 = vmatpush1.msra.mxu0 %v413
    %483 = vmatprep.subr.mxu0 0.0
    %484 = vmatpush1.msra.mxu0 %v414
    %485 = vmatprep.subr.mxu0 0.0
    %486 = vmatpush1.msra.mxu0 %v415
    %487 = vmatprep.subr.mxu0 0.0
    %488 = vmatpush1.msra.mxu0 %v416
    %489 = vmatprep.subr.mxu0 0.0
    %490 = vmatpush1.msra.mxu0 %v417
    %491 = vmatprep.subr.mxu0 0.0
    %492 = vmatpush1.msra.mxu0 %v418
    %493 = vmatprep.subr.mxu0 0.0
    %494 = vmatpush1.msra.mxu0 %v419
    %495 = vmatprep.subr.mxu0 0.0
    %496 = vmatpush1.msra.mxu0 %v420
    %497 = vmatprep.subr.mxu0 0.0
    %498 = vmatpush1.msra.mxu0 %v421
    %499 = vmatprep.subr.mxu0 0.0
    %500 = vmatpush1.msra.mxu0 %v422
    %501 = vmatprep.subr.mxu0 0.0
    %502 = vmatpush1.msra.mxu0 %v423
    %503 = vmatprep.subr.mxu0 0.0
    %504 = vmatpush1.msra.mxu0 %v424
    %505 = vmatprep.subr.mxu0 0.0
    %506 = vmatpush1.msra.mxu0 %v425
    %507 = vmatprep.subr.mxu0 0.0
    %508 = vmatpush1.msra.mxu0 %v426
    %509 = vmatprep.subr.mxu0 0.0
    %510 = vmatpush1.msra.mxu0 %v427
    %511 = vmatprep.subr.mxu0 0.0
    %512 = vmatpush1.msra.mxu0 %v428
    %513 = vmatprep.subr.mxu0 0.0
    %514 = vmatpush1.msra.mxu0 %v429
    %515 = vmatprep.subr.mxu0 0.0
    %516 = vmatpush1.msra.mxu0 %v430
    %517 = vmatprep.subr.mxu0 0.0
    %518 = vmatpush1.msra.mxu0 %v431
    %519 = vmatprep.subr.mxu0 0.0
    %520 = vmatpush1.msra.mxu0 %v432
    %521 = vmatprep.subr.mxu0 0.0
    %522 = vmatpush1.msra.mxu0 %v433
    %523 = vmatprep.subr.mxu0 0.0
    %524 = vmatpush1.msra.mxu0 %v434
    %525 = vmatprep.subr.mxu0 0.0
    %526 = vmatpush1.msra.mxu0 %v435
    %527 = vmatprep.subr.mxu0 0.0
    %528 = vmatpush1.msra.mxu0 %v436
    %529 = vmatprep.subr.mxu0 0.0
    %530 = vmatpush1.msra.mxu0 %v437
    %531 = vmatprep.subr.mxu0 0.0
    %532 = vmatpush1.msra.mxu0 %v438
    %533 = vmatprep.subr.mxu0 0.0
    %534 = vmatpush1.msra.mxu0 %v439
    %535 = vmatprep.subr.mxu0 0.0
    %536 = vmatpush1.msra.mxu0 %v440
    %537 = vmatprep.mubr.f32.mxu0 %v402
    %538 = vmatmul.mubr.f32.gmra.mrb[0].mxu0 %v401
    %v539 = vpop.f32.mrb[0].mxu0
    %v540 = vadd.f32 0.0, %v539
    %v541 = vpop.f32.mrb[0].mxu0
    %542 = vmatprep.mubr.f32.mxu0 %v406
    %543 = vmatmul.mubr.f32.gmra.mrb[0].mxu0 %v405
    %v544 = vpop.f32.mrb[0].mxu0
    %v545 = vadd.f32 0.0, %v544
    %v546 = vpop.f32.mrb[0].mxu0
    %547 = vdwg.mxu0
    %548 = vmatprep.subr.mxu0 0.0
    %549 = vmatpush1.msra.mxu0 %v441
    %550 = vmatprep.subr.mxu0 0.0
    %551 = vmatpush1.msra.mxu0 %v442
    %552 = vmatprep.subr.mxu0 0.0
    %553 = vmatpush1.msra.mxu0 %v443
    %554 = vmatprep.subr.mxu0 0.0
    %555 = vmatpush1.msra.mxu0 %v444
    %556 = vmatprep.subr.mxu0 0.0
    %557 = vmatpush1.msra.mxu0 %v445
    %558 = vmatprep.subr.mxu0 0.0
    %559 = vmatpush1.msra.mxu0 %v446
    %560 = vmatprep.subr.mxu0 0.0
    %561 = vmatpush1.msra.mxu0 %v447
    %562 = vmatprep.subr.mxu0 0.0
    %563 = vmatpush1.msra.mxu0 %v448
    %564 = vmatprep.subr.mxu0 0.0
    %565 = vmatpush1.msra.mxu0 %v449
    %566 = vmatprep.subr.mxu0 0.0
    %567 = vmatpush1.msra.mxu0 %v450
    %568 = vmatprep.subr.mxu0 0.0
    %569 = vmatpush1.msra.mxu0 %v451
    %570 = vmatprep.subr.mxu0 0.0
    %571 = vmatpush1.msra.mxu0 %v452
    %572 = vmatprep.subr.mxu0 0.0
    %573 = vmatpush1.msra.mxu0 %v453
    %574 = vmatprep.subr.mxu0 0.0
    %575 = vmatpush1.msra.mxu0 %v454
    %576 = vmatprep.subr.mxu0 0.0
    %577 = vmatpush1.msra.mxu0 %v455
    %578 = vmatprep.subr.mxu0 0.0
    %579 = vmatpush1.msra.mxu0 %v456
    %580 = vmatprep.subr.mxu0 0.0
    %581 = vmatpush1.msra.mxu0 %v457
    %582 = vmatprep.subr.mxu0 0.0
    %583 = vmatpush1.msra.mxu0 %v458
    %584 = vmatprep.subr.mxu0 0.0
    %585 = vmatpush1.msra.mxu0 %v459
    %586 = vmatprep.subr.mxu0 0.0
    %587 = vmatpush1.msra.mxu0 %v460
    %588 = vmatprep.subr.mxu0 0.0
    %589 = vmatpush1.msra.mxu0 %v461
    %590 = vmatprep.subr.mxu0 0.0
    %591 = vmatpush1.msra.mxu0 %v462
    %592 = vmatprep.subr.mxu0 0.0
    %593 = vmatpush1.msra.mxu0 %v463
    %594 = vmatprep.subr.mxu0 0.0
    %595 = vmatpush1.msra.mxu0 %v464
    %596 = vmatprep.subr.mxu0 0.0
    %597 = vmatpush1.msra.mxu0 %v465
    %598 = vmatprep.subr.mxu0 0.0
    %599 = vmatpush1.msra.mxu0 %v466
    %600 = vmatprep.subr.mxu0 0.0
    %601 = vmatpush1.msra.mxu0 %v467
    %602 = vmatprep.subr.mxu0 0.0
    %603 = vmatpush1.msra.mxu0 %v468
    %604 = vmatprep.subr.mxu0 0.0
    %605 = vmatpush1.msra.mxu0 %v469
    %606 = vmatprep.subr.mxu0 0.0
    %607 = vmatpush1.msra.mxu0 %v470
    %608 = vmatprep.subr.mxu0 0.0
    %609 = vmatpush1.msra.mxu0 %v471
    %610 = vmatprep.subr.mxu0 0.0
    %611 = vmatpush1.msra.mxu0 %v472
    %612 = vmatprep.mubr.f32.mxu0 %v404
    %613 = vmatmul.mubr.f32.gmra.mrb[0].mxu0 %v403
    %v614 = vpop.f32.mrb[0].mxu0
    %v615 = vadd.f32 %v540, %v614
    %v616 = vpop.f32.mrb[0].mxu0
    %617 = vmatprep.mubr.f32.mxu0 %v408
    %618 = vmatmul.mubr.f32.gmra.mrb[0].mxu0 %v407
    %v619 = vpop.f32.mrb[0].mxu0
    %v620 = vadd.f32 %v545, %v619
    %v621 = vpop.f32.mrb[0].mxu0
    %622 = vdwg.mxu0
    %623 = vst [vmem:[%s7] sm:$0xff] %v615
    %624 = vst [vmem:[%s7 + $0x8] sm:$0xff] %v620
    // Predicated region
    $region34: #{syntax_rel_forward.1} parent=1 // pred_check
      _
    $region35: #{syntax_rel_forward.1} parent=1 // pred_check_branch
      %626 = sbr.rel (0) target = $region37
    $region36: #{syntax_rel_forward.1} parent=1 // pred_region
      _
    $region37: #{syntax_rel_forward.1} parent=1 // pred_fallthru
      _
    // Predicated region
    $region38: #{syntax_rel_forward.1} parent=1 // pred_check
      _
    $region39: #{syntax_rel_forward.1} parent=1 // pred_check_branch
      %628 = sbr.rel (0) target = $region41
    $region40: #{syntax_rel_forward.1} parent=1 // pred_region
      _
    $region41: #{syntax_rel_forward.1} parent=1 // pred_fallthru
      _
    %629 = vsyncpa [#allocation3], 1

</llo_original>
